<compile_context>
chip_gen: v5e
topology: v5e:2x2
jax: 0.10.0
libtpu: 0.0.40
codegen_flags: <defaults>
</compile_context>

<pallas_src>
import math
import jax
import jax.numpy as jnp
from jax.experimental import pallas as pl
from jax.experimental.pallas import tpu as pltpu

IN_DIM, H1_DIM, H2_DIM, OUT_DIM = 16, 128, 64, 4
TILE_B_DEFAULT = 4096  # large tile: amortizes per-grid-step overhead, ~8-9 MiB VMEM


def _round_up(n, m):
    return (n + m - 1) // m * m


def qnet_kernel(x_ref, w1_ref, b1_ref, w2_ref, b2_ref, w3_ref, b3_ref, o_ref):
    # All-f32 path with f32 accumulation (kernel is memory-bound; precision is free).
    x = x_ref[...]
    h1 = jnp.maximum(
        jnp.dot(x, w1_ref[...], preferred_element_type=jnp.float32) + b1_ref[...], 0.0)
    h2 = jnp.maximum(
        jnp.dot(h1, w2_ref[...], preferred_element_type=jnp.float32) + b2_ref[...], 0.0)
    o_ref[...] = (jnp.dot(h2, w3_ref[...], preferred_element_type=jnp.float32)
                  + b3_ref[...]).astype(o_ref.dtype)


def _choose_tile_b(batch, tile_b):
    """Pick a batch tile: whole batch if it fits, else aim for >= 2 grid steps
    (so v7x's two TensorCores both get work) capped at tile_b."""
    b8 = _round_up(max(batch, 1), 8)
    if b8 <= tile_b:
        return b8
    half = _round_up(pl.cdiv(b8, 2), 8)
    return min(tile_b, half)


def qnetwork_simple(x, params, tile_b=TILE_B_DEFAULT):
    """x: (B, 16) float32.  params: dict of pre-transposed f32 weights / biases."""
    B = x.shape[0]

    tile_b = _choose_tile_b(B, tile_b)
    padded_b = _round_up(B, tile_b)
    if padded_b != B:
        x = jnp.pad(x, ((0, padded_b - B), (0, 0)))
    num_tiles = padded_b // tile_b

    w1, b1 = params["w1"], params["b1"]
    w2, b2 = params["w2"], params["b2"]
    w3, b3 = params["w3"], params["b3"]

    flops = 2 * padded_b * (IN_DIM * H1_DIM + H1_DIM * H2_DIM + H2_DIM * OUT_DIM)
    bytes_accessed = (padded_b * IN_DIM * 4             # x stream (f32)
                      + padded_b * OUT_DIM * 4          # output stream (f32, 16 B/row)
                      + (IN_DIM * H1_DIM + H1_DIM * H2_DIM + H2_DIM * OUT_DIM) * 4
                      + (H1_DIM + H2_DIM + OUT_DIM) * 4)

    out = pl.pallas_call(
        qnet_kernel,
        out_shape=jax.ShapeDtypeStruct((padded_b, OUT_DIM), jnp.float32),
        grid_spec=pltpu.PrefetchScalarGridSpec(
            num_scalar_prefetch=0,
            grid=(num_tiles,),
            in_specs=[
                pl.BlockSpec((tile_b, IN_DIM), lambda i: (i, 0)),    # x tile (streamed)
                pl.BlockSpec((IN_DIM, H1_DIM), lambda i: (0, 0)),    # w1 (resident)
                pl.BlockSpec((1, H1_DIM), lambda i: (0, 0)),         # b1
                pl.BlockSpec((H1_DIM, H2_DIM), lambda i: (0, 0)),    # w2
                pl.BlockSpec((1, H2_DIM), lambda i: (0, 0)),         # b2
                pl.BlockSpec((H2_DIM, OUT_DIM), lambda i: (0, 0)),   # w3
                pl.BlockSpec((1, OUT_DIM), lambda i: (0, 0)),        # b3
            ],
            out_specs=pl.BlockSpec((tile_b, OUT_DIM), lambda i: (i, 0)),
        ),
        compiler_params=pltpu.CompilerParams(
            dimension_semantics=("parallel",),        # megacore split on v7x
            vmem_limit_bytes=32 * 1024 * 1024,        # headroom; safe on v5e/v6e/v7x
        ),
        cost_estimate=pl.CostEstimate(
            flops=flops, transcendentals=0, bytes_accessed=bytes_accessed),
    )(x, w1, b1, w2, b2, w3, b3)

    return out[:B] if padded_b != B else out


def init_params(key):
    """Deterministic init mirroring nn.Linear default (uniform +/- 1/sqrt(fan_in))."""
    def linear(key, fan_in, fan_out):
        kw, kb = jax.random.split(key)
        bound = 1.0 / math.sqrt(fan_in)
        # stored as (in, out) so kernel can do x @ W directly
        w = jax.random.uniform(kw, (fan_in, fan_out), jnp.float32, -bound, bound)
        b = jax.random.uniform(kb, (1, fan_out), jnp.float32, -bound, bound)
        return w, b

    k1, k2, k3 = jax.random.split(key, 3)
    w1, b1 = linear(k1, IN_DIM, H1_DIM)
    w2, b2 = linear(k2, H1_DIM, H2_DIM)
    w3, b3 = linear(k3, H2_DIM, OUT_DIM)
    return {"w1": w1, "b1": b1, "w2": w2, "b2": b2, "w3": w3, "b3": b3}


def reference(x, p):
    """Pure f32 JAX reference matching the PyTorch forward."""
    h1 = jnp.maximum(x @ p["w1"] + p["b1"], 0.0)
    h2 = jnp.maximum(h1 @ p["w2"] + p["b2"], 0.0)
    return h2 @ p["w3"] + p["b3"]


if __name__ == "__main__":
    key = jax.random.PRNGKey(0)
    kx, kx2, kp = jax.random.split(key, 3)
    params = init_params(kp)

    # Small, tile-aligned batch.
    batch = 8
    x = jax.random.normal(kx, (batch, IN_DIM), jnp.float32)
    out = jax.block_until_ready(qnetwork_simple(x, params))
    ref = reference(x, params)
    assert out.shape == (batch, OUT_DIM), out.shape
    assert jnp.allclose(out, ref, atol=1e-4, rtol=1e-4), "mismatch vs reference (aligned)"

    # Ragged batch: exercises batch padding + tail slicing.
    batch2 = 37
    x2 = jax.random.normal(kx2, (batch2, IN_DIM), jnp.float32)
    out2 = jax.block_until_ready(qnetwork_simple(x2, params))
    ref2 = reference(x2, params)
    assert out2.shape == (batch2, OUT_DIM), out2.shape
    assert jnp.allclose(out2, ref2, atol=1e-4, rtol=1e-4), "mismatch vs reference (ragged)"

    print("KERNEL_OK")
</pallas_src>

<mosaic_0001>
module attributes {stable_mosaic.version = 11 : i64} {
  func.func @qnet_kernel(%arg0: i32, %arg1: memref<8x16xf32, #tpu.memory_space<vmem>>, %arg2: memref<16x128xf32, #tpu.memory_space<vmem>>, %arg3: memref<1x128xf32, #tpu.memory_space<vmem>>, %arg4: memref<128x64xf32, #tpu.memory_space<vmem>>, %arg5: memref<1x64xf32, #tpu.memory_space<vmem>>, %arg6: memref<64x4xf32, #tpu.memory_space<vmem>>, %arg7: memref<1x4xf32, #tpu.memory_space<vmem>>, %arg8: memref<8x4xf32, #tpu.memory_space<vmem>>) attributes {dimension_semantics = [#tpu.dimension_semantics<parallel>], iteration_bounds = array<i64: 1>, scalar_prefetch = 0 : i64, scratch_operands = 0 : i64, tpu.core_type = #tpu.core_type<tc>, window_params = [{transform_indices = @transform_0, window_bounds = array<i64: 8, 16>}, {pipeline_mode = #tpu.pipeline_mode<synchronous>, transform_indices = @transform_1, window_bounds = array<i64: 16, 128>}, {pipeline_mode = #tpu.pipeline_mode<synchronous>, transform_indices = @transform_2, window_bounds = array<i64: 1, 128>}, {pipeline_mode = #tpu.pipeline_mode<synchronous>, transform_indices = @transform_3, window_bounds = array<i64: 128, 64>}, {pipeline_mode = #tpu.pipeline_mode<synchronous>, transform_indices = @transform_4, window_bounds = array<i64: 1, 64>}, {pipeline_mode = #tpu.pipeline_mode<synchronous>, transform_indices = @transform_5, window_bounds = array<i64: 64, 4>}, {pipeline_mode = #tpu.pipeline_mode<synchronous>, transform_indices = @transform_6, window_bounds = array<i64: 1, 4>}, {transform_indices = @transform_7, window_bounds = array<i64: 8, 4>}]} {
    %c0 = arith.constant 0 : index
    %c0_0 = arith.constant 0 : index
    %0 = vector.load %arg1[%c0, %c0_0] : memref<8x16xf32, #tpu.memory_space<vmem>>, vector<8x16xf32>
    %c0_1 = arith.constant 0 : index
    %c0_2 = arith.constant 0 : index
    %1 = vector.load %arg2[%c0_1, %c0_2] : memref<16x128xf32, #tpu.memory_space<vmem>>, vector<16x128xf32>
    %cst = arith.constant dense<0.000000e+00> : vector<8x128xf32>
    %2 = tpu.matmul %0, %1, %cst {dimension_numbers = #tpu.dot_dimension_numbers<[1], [0], [0], [1], [0, 0, 1, 1], [], []>} : vector<8x16xf32>, vector<16x128xf32>, vector<8x128xf32> -> vector<8x128xf32>
    %c0_3 = arith.constant 0 : index
    %c0_4 = arith.constant 0 : index
    %3 = vector.load %arg3[%c0_3, %c0_4] : memref<1x128xf32, #tpu.memory_space<vmem>>, vector<1x128xf32>
    %4 = vector.broadcast %3 : vector<1x128xf32> to vector<8x128xf32>
    %5 = arith.addf %2, %4 : vector<8x128xf32>
    %cst_5 = arith.constant 0.000000e+00 : f32
    %6 = vector.broadcast %cst_5 : f32 to vector<8x128xf32>
    %7 = arith.maximumf %5, %6 : vector<8x128xf32>
    %c0_6 = arith.constant 0 : index
    %c0_7 = arith.constant 0 : index
    %8 = vector.load %arg4[%c0_6, %c0_7] : memref<128x64xf32, #tpu.memory_space<vmem>>, vector<128x64xf32>
    %cst_8 = arith.constant dense<0.000000e+00> : vector<8x64xf32>
    %9 = tpu.matmul %7, %8, %cst_8 {dimension_numbers = #tpu.dot_dimension_numbers<[1], [0], [0], [1], [0, 0, 1, 1], [], []>} : vector<8x128xf32>, vector<128x64xf32>, vector<8x64xf32> -> vector<8x64xf32>
    %c0_9 = arith.constant 0 : index
    %c0_10 = arith.constant 0 : index
    %10 = vector.load %arg5[%c0_9, %c0_10] : memref<1x64xf32, #tpu.memory_space<vmem>>, vector<1x64xf32>
    %11 = vector.broadcast %10 : vector<1x64xf32> to vector<8x64xf32>
    %12 = arith.addf %9, %11 : vector<8x64xf32>
    %cst_11 = arith.constant 0.000000e+00 : f32
    %13 = vector.broadcast %cst_11 : f32 to vector<8x64xf32>
    %14 = arith.maximumf %12, %13 : vector<8x64xf32>
    %c0_12 = arith.constant 0 : index
    %c0_13 = arith.constant 0 : index
    %15 = vector.load %arg6[%c0_12, %c0_13] : memref<64x4xf32, #tpu.memory_space<vmem>>, vector<64x4xf32>
    %cst_14 = arith.constant dense<0.000000e+00> : vector<8x4xf32>
    %16 = tpu.matmul %14, %15, %cst_14 {dimension_numbers = #tpu.dot_dimension_numbers<[1], [0], [0], [1], [0, 0, 1, 1], [], []>} : vector<8x64xf32>, vector<64x4xf32>, vector<8x4xf32> -> vector<8x4xf32>
    %c0_15 = arith.constant 0 : index
    %c0_16 = arith.constant 0 : index
    %17 = vector.load %arg7[%c0_15, %c0_16] : memref<1x4xf32, #tpu.memory_space<vmem>>, vector<1x4xf32>
    %18 = vector.broadcast %17 : vector<1x4xf32> to vector<8x4xf32>
    %19 = arith.addf %16, %18 : vector<8x4xf32>
    %c0_17 = arith.constant 0 : index
    %c0_18 = arith.constant 0 : index
    %20 = vector.load %arg8[%c0_17, %c0_18] : memref<8x4xf32, #tpu.memory_space<vmem>>, vector<8x4xf32>
    tpu.vector_store %arg8[%c0_17, %c0_18], %19 {strides = array<i32>} : memref<8x4xf32, #tpu.memory_space<vmem>>, vector<8x4xf32>,
    return
  }
  func.func @transform_0(%arg0: i32) -> (i32, i32) {
    %c0_i32 = arith.constant 0 : i32
    %c0_i32_0 = arith.constant 0 : i32
    return %arg0, %c0_i32 : i32, i32
  }
  func.func @transform_1(%arg0: i32) -> (i32, i32) {
    %c0_i32 = arith.constant 0 : i32
    %c0_i32_0 = arith.constant 0 : i32
    %c0_i32_1 = arith.constant 0 : i32
    return %c0_i32, %c0_i32_0 : i32, i32
  }
  func.func @transform_2(%arg0: i32) -> (i32, i32) {
    %c0_i32 = arith.constant 0 : i32
    %c0_i32_0 = arith.constant 0 : i32
    %c0_i32_1 = arith.constant 0 : i32
    return %c0_i32, %c0_i32_0 : i32, i32
  }
  func.func @transform_3(%arg0: i32) -> (i32, i32) {
    %c0_i32 = arith.constant 0 : i32
    %c0_i32_0 = arith.constant 0 : i32
    %c0_i32_1 = arith.constant 0 : i32
    return %c0_i32, %c0_i32_0 : i32, i32
  }
  func.func @transform_4(%arg0: i32) -> (i32, i32) {
    %c0_i32 = arith.constant 0 : i32
    %c0_i32_0 = arith.constant 0 : i32
    %c0_i32_1 = arith.constant 0 : i32
    return %c0_i32, %c0_i32_0 : i32, i32
  }
  func.func @transform_5(%arg0: i32) -> (i32, i32) {
    %c0_i32 = arith.constant 0 : i32
    %c0_i32_0 = arith.constant 0 : i32
    %c0_i32_1 = arith.constant 0 : i32
    return %c0_i32, %c0_i32_0 : i32, i32
  }
  func.func @transform_6(%arg0: i32) -> (i32, i32) {
    %c0_i32 = arith.constant 0 : i32
    %c0_i32_0 = arith.constant 0 : i32
    %c0_i32_1 = arith.constant 0 : i32
    return %c0_i32, %c0_i32_0 : i32, i32
  }
  func.func @transform_7(%arg0: i32) -> (i32, i32) {
    %c0_i32 = arith.constant 0 : i32
    %c0_i32_0 = arith.constant 0 : i32
    return %arg0, %c0_i32 : i32, i32
  }
}

</mosaic_0001>

<llo_original>
// kernel: tpu_custom_call.1
$region0: #{tpu_custom_call.1}
  #allocation0 [shape = 'u32[]', space=smem, size = 0x4, offset = 0x4, fixed_abs, tag = 'smem constant byte address 0x4 - core index']
  #allocation1 [shape = 'u32[72,128]{1,0:T(1,128)}', space=vmem, size = 0x9000, scoped, tag = 'internal scratch']
  %s0 = inlined_call_operand.vmem [shape: f32[8,16], index: 0, kind: input, shape index: {}]
  %s1 = inlined_call_operand.vmem [shape: f32[16,128], index: 1, kind: input, shape index: {}]
  %s2 = inlined_call_operand.vmem [shape: f32[1,128], index: 2, kind: input, shape index: {}]
  %s3 = inlined_call_operand.vmem [shape: f32[128,64], index: 3, kind: input, shape index: {}]
  %s4 = inlined_call_operand.vmem [shape: f32[1,64], index: 4, kind: input, shape index: {}]
  %s5 = inlined_call_operand.vmem [shape: f32[64,4], index: 5, kind: input, shape index: {}]
  %s6 = inlined_call_operand.vmem [shape: f32[1,4], index: 6, kind: input, shape index: {}]
  %s7 = inlined_call_operand.vmem [shape: f32[8,4], index: 7, kind: output, shape index: {}]
  %s8 = sld [smem:[#allocation0]]
  $region38: #{tpu_custom_call.1} parent=0
    _
  %s10 = ssub.s32 1, %s8
  %s11 = scalar_select 0, %s10, %s8
  // Predicated region
  $region2: #{tpu_custom_call.1} parent=0 // pred_check
    _
  $region3: #{tpu_custom_call.1} parent=0 // pred_check_branch
    %13 = sbr.rel (0) target = $region5
  $region4: #{tpu_custom_call.1} parent=0 // pred_region
    _
  $region5: #{tpu_custom_call.1} parent=0 // pred_fallthru
    _
  // Predicated region
  $region6: #{tpu_custom_call.1} parent=0 // pred_check
    _
  $region7: #{tpu_custom_call.1} parent=0 // pred_check_branch
    %15 = sbr.rel (0) target = $region9
  $region8: #{tpu_custom_call.1} parent=0 // pred_region
    _
  $region9: #{tpu_custom_call.1} parent=0 // pred_fallthru
    _
  // Predicated region
  $region10: #{tpu_custom_call.1} parent=0 // pred_check
    _
  $region11: #{tpu_custom_call.1} parent=0 // pred_check_branch
    %17 = sbr.rel (0) target = $region13
  $region12: #{tpu_custom_call.1} parent=0 // pred_region
    _
  $region13: #{tpu_custom_call.1} parent=0 // pred_fallthru
    _
  // Predicated region
  $region14: #{tpu_custom_call.1} parent=0 // pred_check
    _
  $region15: #{tpu_custom_call.1} parent=0 // pred_check_branch
    %19 = sbr.rel (0) target = $region17
  $region16: #{tpu_custom_call.1} parent=0 // pred_region
    _
  $region17: #{tpu_custom_call.1} parent=0 // pred_fallthru
    _
  // Predicated region
  $region18: #{tpu_custom_call.1} parent=0 // pred_check
    _
  $region19: #{tpu_custom_call.1} parent=0 // pred_check_branch
    %21 = sbr.rel (0) target = $region21
  $region20: #{tpu_custom_call.1} parent=0 // pred_region
    _
  $region21: #{tpu_custom_call.1} parent=0 // pred_fallthru
    _
  // Predicated region
  $region22: #{tpu_custom_call.1} parent=0 // pred_check
    _
  $region23: #{tpu_custom_call.1} parent=0 // pred_check_branch
    %23 = sbr.rel (0) target = $region25
  $region24: #{tpu_custom_call.1} parent=0 // pred_region
    _
  $region25: #{tpu_custom_call.1} parent=0 // pred_fallthru
    _
  // Predicated region
  $region26: #{tpu_custom_call.1} parent=0 // pred_check
    _
  $region27: #{tpu_custom_call.1} parent=0 // pred_check_branch
    %25 = sbr.rel (0) target = $region29
  $region28: #{tpu_custom_call.1} parent=0 // pred_region
    _
  $region29: #{tpu_custom_call.1} parent=0 // pred_fallthru
    _
  %v26 = vld [vmem:[%s0] sm:$0xff]
  %v27 = vld [vmem:[%s1] sm:$0xff]
  %v28 = vld [vmem:[%s1 + $0x8] sm:$0xff]
  %v29 = vld [vmem:[%s2] sm:$0x1]
  %v31 = vperm.slane %v29, 0
  %vm33 = vcmask 130048
  %v35 = vsel %vm33, %v26, 0
  %37 = vmatpush.msra.mxu0 0.0
  %38 = vmatpush.msra.mxu0 0.0
  %39 = vmatpush.msra.mxu0 0.0
  %40 = vmatpush.msra.mxu0 0.0
  %41 = vmatpush.msra.mxu0 0.0
  %42 = vmatpush.msra.mxu0 0.0
  %43 = vmatpush.msra.mxu0 0.0
  %44 = vmatpush.msra.mxu0 0.0
  %45 = vmatpush.msra.mxu0 0.0
  %46 = vmatpush.msra.mxu0 0.0
  %47 = vmatpush.msra.mxu0 0.0
  %48 = vmatpush.msra.mxu0 0.0
  %49 = vmatpush.msra.mxu0 0.0
  %50 = vmatpush.msra.mxu0 0.0
  %51 = vmatpush.msra.mxu0 %v28
  %52 = vmatpush.msra.mxu0 %v27
  %53 = vmatmul.f32.gmra.mxu0 %v35
  %v54 = vpop.f32.mrf.mxu0
  %v55 = vadd.f32 %v31, %v54
  %56 = vdwg.mxu0
  %v57 = vmax.f32 %v55, 0.0
  %v58 = vld [vmem:[%s3] sm:$0xff]
  %v59 = vld [vmem:[%s3 + $0x8] sm:$0xff]
  %v60 = vld [vmem:[%s3 + $0x10] sm:$0xff]
  %v61 = vld [vmem:[%s3 + $0x18] sm:$0xff]
  %v62 = vld [vmem:[%s3 + $0x20] sm:$0xff]
  %v63 = vld [vmem:[%s3 + $0x28] sm:$0xff]
  %v64 = vld [vmem:[%s3 + $0x30] sm:$0xff]
  %v65 = vld [vmem:[%s3 + $0x38] sm:$0xff]
  %v66 = vld [vmem:[%s3 + $0x40] sm:$0xff]
  %v67 = vld [vmem:[%s3 + $0x48] sm:$0xff]
  %v68 = vld [vmem:[%s3 + $0x50] sm:$0xff]
  %v69 = vld [vmem:[%s3 + $0x58] sm:$0xff]
  %v70 = vld [vmem:[%s3 + $0x60] sm:$0xff]
  %v71 = vld [vmem:[%s3 + $0x68] sm:$0xff]
  %v72 = vld [vmem:[%s3 + $0x70] sm:$0xff]
  %v73 = vld [vmem:[%s3 + $0x78] sm:$0xff]
  %v74 = vld [vmem:[%s4] sm:$0x1]
  %v76 = vperm.slane %v74, 0
  %78 = vmatpush.msra.mxu0 %v73
  %79 = vmatpush.msra.mxu0 %v72
  %80 = vmatpush.msra.mxu0 %v71
  %81 = vmatpush.msra.mxu0 %v70
  %82 = vmatpush.msra.mxu0 %v69
  %83 = vmatpush.msra.mxu0 %v68
  %84 = vmatpush.msra.mxu0 %v67
  %85 = vmatpush.msra.mxu0 %v66
  %86 = vmatpush.msra.mxu0 %v65
  %87 = vmatpush.msra.mxu0 %v64
  %88 = vmatpush.msra.mxu0 %v63
  %89 = vmatpush.msra.mxu0 %v62
  %90 = vmatpush.msra.mxu0 %v61
  %91 = vmatpush.msra.mxu0 %v60
  %92 = vmatpush.msra.mxu0 %v59
  %93 = vmatpush.msra.mxu0 %v58
  %94 = vmatmul.f32.gmra.mxu0 %v57
  %v95 = vpop.f32.mrf.mxu0
  %v96 = vadd.f32 %v76, %v95
  %97 = vdwg.mxu0
  %v98 = vmax.f32 %v96, 0.0
  %v99 = vld [vmem:[%s5] sm:$0xff]
  %v100 = vld [vmem:[%s5 + $0x8] sm:$0xff]
  %v101 = vld [vmem:[%s5 + $0x10] sm:$0xff]
  %v102 = vld [vmem:[%s5 + $0x18] sm:$0xff]
  %v103 = vld [vmem:[%s5 + $0x20] sm:$0xff]
  %v104 = vld [vmem:[%s5 + $0x28] sm:$0xff]
  %v105 = vld [vmem:[%s5 + $0x30] sm:$0xff]
  %v106 = vld [vmem:[%s5 + $0x38] sm:$0xff]
  %v107 = vld [vmem:[%s6] sm:$0x1]
  %v109 = vperm.slane %v107, 0
  %vm111 = vcmask 523264
  %v113 = vsel %vm111, %v98, 0
  %115 = vmatpush.msra.mxu0 0.0
  %116 = vmatpush.msra.mxu0 0.0
  %117 = vmatpush.msra.mxu0 0.0
  %118 = vmatpush.msra.mxu0 0.0
  %119 = vmatpush.msra.mxu0 0.0
  %120 = vmatpush.msra.mxu0 0.0
  %121 = vmatpush.msra.mxu0 0.0
  %122 = vmatpush.msra.mxu0 0.0
  %123 = vmatpush.msra.mxu0 %v106
  %124 = vmatpush.msra.mxu0 %v105
  %125 = vmatpush.msra.mxu0 %v104
  %126 = vmatpush.msra.mxu0 %v103
  %127 = vmatpush.msra.mxu0 %v102
  %128 = vmatpush.msra.mxu0 %v101
  %129 = vmatpush.msra.mxu0 %v100
  %130 = vmatpush.msra.mxu0 %v99
  %131 = vmatmul.f32.gmra.mxu0 %v113
  %v132 = vpop.f32.mrf.mxu0
  %v133 = vadd.f32 %v109, %v132
  %134 = vdwg.mxu0
  %vm135 = vcmask 31744
  %136 = vst.msk [vmem:[%s7] sm:$0xff] %vm135, %v133
  // Predicated region
  $region30: #{tpu_custom_call.1} parent=0 // pred_check
    _
  $region31: #{tpu_custom_call.1} parent=0 // pred_check_branch
    %138 = sbr.rel (0) target = $region33
  $region32: #{tpu_custom_call.1} parent=0 // pred_region
    _
  $region33: #{tpu_custom_call.1} parent=0 // pred_fallthru
    _
  // Predicated region
  $region34: #{tpu_custom_call.1} parent=0 // pred_check
    _
  $region35: #{tpu_custom_call.1} parent=0 // pred_check_branch
    %140 = sbr.rel (0) target = $region37
  $region36: #{tpu_custom_call.1} parent=0 // pred_region
    _
  $region37: #{tpu_custom_call.1} parent=0 // pred_fallthru
    _

</llo_original>
